<compile_context>
chip_gen: v6e
topology: v6e:2x2x1
jax: 0.10.0
libtpu: 0.0.40
codegen_flags: <defaults>
</compile_context>

<pallas_src>
import functools

import jax
import jax.numpy as jnp
from jax.experimental import pallas as pl
from jax.experimental.pallas import tpu as pltpu


# (kernel, stride, pad, c_in, c_out, activation) per conv layer.
_LAYERS = (
    (4, 2, 1, 1,   64,  "leaky_relu"),
    (4, 2, 1, 64,  128, "leaky_relu"),
    (4, 2, 1, 128, 256, "leaky_relu"),
    (3, 1, 0, 256, 1,   "sigmoid"),
)


def _round_up(n, m):
    return ((n + m - 1) // m) * m


# ---------------------------------------------------------------------------
# Pallas kernel: fused (patches @ W) matmul + activation epilogue.
# ---------------------------------------------------------------------------
def _matmul_act_kernel(x_ref, w_ref, o_ref, *, act):
    # x: (TM, K) f32 patch rows, w: (K, N) bf16 VMEM-resident weights.
    x = x_ref[...].astype(jnp.bfloat16)                       # bf16 into the MXU
    y = jnp.dot(x, w_ref[...], preferred_element_type=jnp.float32)
    if act == "leaky_relu":
        y = jnp.where(y > 0, y, 0.2 * y)                      # VPU, f32
    elif act == "sigmoid":
        y = jax.nn.sigmoid(y)                                 # EUP, f32
    o_ref[...] = y


def _matmul_act(patches, w_mat, act, *, tm_max=256):
    """act(patches @ w_mat): rows tiled over a 1-D grid, weights resident."""
    M, K = patches.shape
    Kw, N = w_mat.shape
    assert K == Kw, (K, Kw)

    m_pad = _round_up(M, 8)
    tm = m_pad if m_pad <= tm_max else tm_max
    m_pad = _round_up(M, tm)
    if m_pad != M:
        patches = jnp.pad(patches, ((0, m_pad - M), (0, 0)))

    out = pl.pallas_call(
        functools.partial(_matmul_act_kernel, act=act),
        out_shape=jax.ShapeDtypeStruct((m_pad, N), jnp.float32),
        grid=(m_pad // tm,),
        in_specs=[
            pl.BlockSpec((tm, K), lambda i: (i, 0)),    # pipelined activations
            pl.BlockSpec((K, N), lambda i: (0, 0)),     # weights stay in VMEM
        ],
        out_specs=pl.BlockSpec((tm, N), lambda i: (i, 0)),
        compiler_params=pltpu.CompilerParams(
            dimension_semantics=("parallel",),          # megacore on v7x
        ),
    )(patches, w_mat)
    return out[:M]


# ---------------------------------------------------------------------------
# im2col (plain-JAX layout plumbing): NHWC -> (B*H_out*W_out, k*k*C) rows.
# Patch feature order is (kh, kw, c) major->minor, matching the weight reshape.
# ---------------------------------------------------------------------------
def _im2col(x, k, stride, pad):
    B, H, W, C = x.shape
    if pad:
        x = jnp.pad(x, ((0, 0), (pad, pad), (pad, pad), (0, 0)))
    h_out = (H + 2 * pad - k) // stride + 1
    w_out = (W + 2 * pad - k) // stride + 1
    cols = []
    for kh in range(k):
        for kw in range(k):
            cols.append(x[:, kh:kh + stride * h_out:stride,
                          kw:kw + stride * w_out:stride, :])
    patches = jnp.concatenate(cols, axis=-1)            # (B, h_out, w_out, k*k*C)
    return patches.reshape(B * h_out * w_out, k * k * C), (B, h_out, w_out)


# ---------------------------------------------------------------------------
# Parameters.
# ---------------------------------------------------------------------------
def init_params(key):
    """Conv weights in HWIO layout (kh, kw, c_in, c_out), U(-1/sqrt(fan_in), ..).

    A torch OIHW weight `w_t` maps to this layout via w_t.permute(2, 3, 1, 0).
    """
    params = []
    for (k, _, _, c_in, c_out, _) in _LAYERS:
        key, sub = jax.random.split(key)
        bound = 1.0 / jnp.sqrt(c_in * k * k)
        w = jax.random.uniform(sub, (k, k, c_in, c_out), jnp.float32, -bound, bound)
        params.append(w)
    return tuple(params)


def prepare_matmul_weights(params):
    """HWIO conv weights -> bf16 (k*k*c_in, c_out) matmul matrices.

    The final 1-channel head is zero-padded to 128 output columns so the
    kernel's output store is lane-dense; the wrapper slices column 0.
    """
    mats = []
    for w, (k, _, _, c_in, c_out, _) in zip(params, _LAYERS):
        m = w.reshape(k * k * c_in, c_out).astype(jnp.bfloat16)
        if c_out == 1:
            m = jnp.pad(m, ((0, 0), (0, 127)))
        mats.append(m)
    return tuple(mats)


# ---------------------------------------------------------------------------
# Forward pass.
# ---------------------------------------------------------------------------
def discriminator_conv_forward(x_nchw, w_mats):
    """x_nchw: (B, 1, H, W) f32. Returns (B*H4*W4, 1) probabilities
    (== (B, 1) for 28x28 inputs, matching torch's reshape(-1, 1))."""
    x = jnp.transpose(x_nchw, (0, 2, 3, 1)).astype(jnp.float32)  # NHWC
    for w_mat, (k, s, p, _c_in, c_out, act) in zip(w_mats, _LAYERS):
        patches, (b, h, w) = _im2col(x, k, s, p)
        y = _matmul_act(patches, w_mat, act)
        if act == "sigmoid":                 # final head: keep real column only
            return y[:, 0:1]
        x = y.reshape(b, h, w, c_out)
    return x


def reference_forward(x_nchw, params):
    """Plain-JAX reference (lax conv) with the same bf16-in / f32-accum math."""
    x = jnp.transpose(x_nchw, (0, 2, 3, 1)).astype(jnp.float32)
    for w, (k, s, p, _c_in, _c_out, act) in zip(params, _LAYERS):
        y = jax.lax.conv_general_dilated(
            x.astype(jnp.bfloat16), w.astype(jnp.bfloat16),
            window_strides=(s, s), padding=((p, p), (p, p)),
            dimension_numbers=("NHWC", "HWIO", "NHWC"),
            preferred_element_type=jnp.float32)
        if act == "leaky_relu":
            x = jnp.where(y > 0, y, 0.2 * y)
        else:
            x = jax.nn.sigmoid(y)
    return x.reshape(-1, 1)


if __name__ == "__main__":
    key = jax.random.PRNGKey(0)
    k_params, k_x = jax.random.split(key)

    params = init_params(k_params)
    w_mats = prepare_matmul_weights(params)

    # MNIST-sized input: 28 -> 14 -> 7 -> 3 -> 1, so the head reshapes to (B, 1).
    x = jax.random.normal(k_x, (2, 1, 28, 28), dtype=jnp.float32)  # NCHW

    out = jax.block_until_ready(discriminator_conv_forward(x, w_mats))
    ref = jax.block_until_ready(reference_forward(x, params))

    assert out.shape == (2, 1), out.shape
    assert bool(jnp.all(jnp.isfinite(out)))
    assert jnp.allclose(out, ref, atol=2e-3, rtol=2e-3), (out, ref)

    print("KERNEL_OK")
</pallas_src>

<mosaic_0001>
module attributes {stable_mosaic.version = 11 : i64} {
  func.func @_matmul_act_kernel(%arg0: i32, %arg1: memref<256x16xf32, #tpu.memory_space<vmem>>, %arg2: memref<16x64xbf16, #tpu.memory_space<vmem>>, %arg3: memref<256x64xf32, #tpu.memory_space<vmem>>) attributes {dimension_semantics = [#tpu.dimension_semantics<parallel>], iteration_bounds = array<i64: 2>, scalar_prefetch = 0 : i64, scratch_operands = 0 : i64, tpu.core_type = #tpu.core_type<tc>, window_params = [{transform_indices = @transform_0, window_bounds = array<i64: 256, 16>}, {pipeline_mode = #tpu.pipeline_mode<synchronous>, transform_indices = @transform_1, window_bounds = array<i64: 16, 64>}, {transform_indices = @transform_2, window_bounds = array<i64: 256, 64>}]} {
    %c0 = arith.constant 0 : index
    %c0_0 = arith.constant 0 : index
    %0 = vector.load %arg1[%c0, %c0_0] : memref<256x16xf32, #tpu.memory_space<vmem>>, vector<256x16xf32>
    %1 = arith.truncf %0 : vector<256x16xf32> to vector<256x16xbf16>
    %c0_1 = arith.constant 0 : index
    %c0_2 = arith.constant 0 : index
    %2 = vector.load %arg2[%c0_1, %c0_2] : memref<16x64xbf16, #tpu.memory_space<vmem>>, vector<16x64xbf16>
    %cst = arith.constant dense<0.000000e+00> : vector<256x64xf32>
    %3 = tpu.matmul %1, %2, %cst {dimension_numbers = #tpu.dot_dimension_numbers<[1], [0], [0], [1], [0, 0, 1, 1], [], []>} : vector<256x16xbf16>, vector<16x64xbf16>, vector<256x64xf32> -> vector<256x64xf32>
    %cst_3 = arith.constant 0.000000e+00 : f32
    %4 = vector.broadcast %cst_3 : f32 to vector<256x64xf32>
    %5 = arith.cmpf ogt, %3, %4 : vector<256x64xf32>
    %cst_4 = arith.constant 2.000000e-01 : f32
    %6 = vector.broadcast %cst_4 : f32 to vector<256x64xf32>
    %7 = arith.mulf %6, %3 : vector<256x64xf32>
    %8 = arith.select %5, %3, %7 : vector<256x64xi1>, vector<256x64xf32>
    %c0_5 = arith.constant 0 : index
    %c0_6 = arith.constant 0 : index
    %9 = vector.load %arg3[%c0_5, %c0_6] : memref<256x64xf32, #tpu.memory_space<vmem>>, vector<256x64xf32>
    tpu.vector_store %arg3[%c0_5, %c0_6], %8 {strides = array<i32>} : memref<256x64xf32, #tpu.memory_space<vmem>>, vector<256x64xf32>,
    return
  }
  func.func @transform_0(%arg0: i32) -> (i32, i32) {
    %c0_i32 = arith.constant 0 : i32
    %c0_i32_0 = arith.constant 0 : i32
    return %arg0, %c0_i32 : i32, i32
  }
  func.func @transform_1(%arg0: i32) -> (i32, i32) {
    %c0_i32 = arith.constant 0 : i32
    %c0_i32_0 = arith.constant 0 : i32
    %c0_i32_1 = arith.constant 0 : i32
    return %c0_i32, %c0_i32_0 : i32, i32
  }
  func.func @transform_2(%arg0: i32) -> (i32, i32) {
    %c0_i32 = arith.constant 0 : i32
    %c0_i32_0 = arith.constant 0 : i32
    return %arg0, %c0_i32 : i32, i32
  }
}

</mosaic_0001>

<llo_original>
// kernel: tpu_custom_call.1
$region0: #{tpu_custom_call.1}
  #allocation0 [shape = 'u32[]', space=smem, size = 0x4, offset = 0x4, fixed_abs, tag = 'smem constant byte address 0x4 - core index']
  #allocation1 [shape = 'u32[144,128]{1,0:T(1,128)}', space=vmem, size = 0x12000, scoped, tag = 'internal scratch']
  %s0 = inlined_call_operand.vmem [shape: f32[512,16], index: 0, kind: input, shape index: {}]
  %s1 = inlined_call_operand.vmem [shape: bf16[16,64], index: 1, kind: input, shape index: {}]
  %s2 = inlined_call_operand.vmem [shape: f32[512,64], index: 2, kind: output, shape index: {}]
  %s3 = sld [smem:[#allocation0]]
  $region41: #{tpu_custom_call.1} parent=0
    _
  %s5 = ssub.s32 1, %s3
  %s6 = scalar_select 0, %s5, %s3
  loop: start=0, step=1, limit=4
  $region2: #{tpu_custom_call.1} parent=0 // loop_pre_header
    _
  $region3: #{tpu_custom_call.1} parent=0 // loop_header
    %s8 = sphi 0, %s12
    %p9 = scmp.ge.s32.totalorder %s8, 4
    %s18 = sphi 0, %s20
    %s21 = sphi 0, %s18
    %s22 = sphi 0, %s21
    %s38 = sphi 0, %s22
    %s42 = sphi 0, %s42
    %s44 = sphi 0, %s42
    %s45 = sphi 0, %s44
    %s59 = sphi 0, %s45
    %s65 = sphi 0, %s67
    %s68 = sphi 0, %s65
    %s69 = sphi 0, %s68
    %s85 = sphi 0, %s69
  $region4: #{tpu_custom_call.1} parent=0 // loop_header_branch
    %11 = sbr.rel (%p9) target = $region8
  $region5: #{tpu_custom_call.1} parent=0 // loop_body
    %s13 = ssub.s32 %s8, 1
    %s14 = ssub.s32 %s8, 2
    %s15 = sadd.s32 %s8, 1
    %s16 = ssub.s32 %s8, %s15
    %p17 = scmp.eq.s32.totalorder %s16, 0
    %s19 = sadd.s32 %s18, 1
    %s20 = scalar_select %p17, %s18, %s19
    %p23 = pneg %p17
    %p24 = scmp.eq.s32.totalorder %s8, 1
    %p25 = por %p23, %p24
    %p26 = scmp.ne.s32.totalorder %s18, %s21
    %p27 = scmp.eq.s32.totalorder %s8, 0
    %p28 = por %p26, %p27
    %p29 = scmp.ne.s32.totalorder %s18, %s21
    %p30 = scmp.eq.s32.totalorder %s13, 1
    %p31 = por %p29, %p30
    %p32 = scmp.ne.s32.totalorder %s21, %s22
    %p33 = scmp.eq.s32.totalorder %s13, 0
    %p34 = por %p32, %p33
    %p35 = scmp.ne.s32.totalorder %s21, %s22
    %p36 = scmp.eq.s32.totalorder %s14, 1
    %p37 = por %p35, %p36
    %p39 = scmp.ne.s32.totalorder %s22, %s38
    %p40 = scmp.eq.s32.totalorder %s14, 0
    %p41 = por %p39, %p40
    %s43 = sadd.s32 %s42, 1
    %p46 = scmp.eq.s32.totalorder %s8, 1
    %p47 = scmp.ne.s32.totalorder %s42, %s44
    %p48 = scmp.eq.s32.totalorder %s8, 0
    %p49 = por %p47, %p48
    %p50 = scmp.ne.s32.totalorder %s42, %s44
    %p51 = scmp.eq.s32.totalorder %s13, 1
    %p52 = por %p50, %p51
    %p53 = scmp.ne.s32.totalorder %s44, %s45
    %p54 = scmp.eq.s32.totalorder %s13, 0
    %p55 = por %p53, %p54
    %p56 = scmp.ne.s32.totalorder %s44, %s45
    %p57 = scmp.eq.s32.totalorder %s14, 1
    %p58 = por %p56, %p57
    %p60 = scmp.ne.s32.totalorder %s45, %s59
    %p61 = scmp.eq.s32.totalorder %s14, 0
    %p62 = por %p60, %p61
    %s63 = ssub.s32 %s8, %s15
    %p64 = scmp.eq.s32.totalorder %s63, 0
    %s66 = sadd.s32 %s65, 1
    %s67 = scalar_select %p64, %s65, %s66
    %p70 = pneg %p64
    %p71 = scmp.eq.s32.totalorder %s8, 1
    %p72 = por %p70, %p71
    %p73 = scmp.ne.s32.totalorder %s65, %s68
    %p74 = scmp.eq.s32.totalorder %s8, 0
    %p75 = por %p73, %p74
    %p76 = scmp.ne.s32.totalorder %s65, %s68
    %p77 = scmp.eq.s32.totalorder %s13, 1
    %p78 = por %p76, %p77
    %p79 = scmp.ne.s32.totalorder %s68, %s69
    %p80 = scmp.eq.s32.totalorder %s13, 0
    %p81 = por %p79, %p80
    %p82 = scmp.ne.s32.totalorder %s68, %s69
    %p83 = scmp.eq.s32.totalorder %s14, 1
    %p84 = por %p82, %p83
    %p86 = scmp.ne.s32.totalorder %s69, %s85
    %p87 = scmp.eq.s32.totalorder %s14, 0
    %p88 = por %p86, %p87
    %p89 = scmp.le.s32.totalorder 1, %s8
    %p90 = scmp.lt.s32.totalorder %s8, 3
    %p91 = pnand %p89, %p90
    %p92 = pneg %p91
    // Predicated region
    $region9: #{tpu_custom_call.1} parent=5 // pred_check
      _
    $region10: #{tpu_custom_call.1} parent=5 // pred_check_branch
      %94 = sbr.rel (%p91) target = $region12
    $region11: #{tpu_custom_call.1} parent=5 // pred_region
      %s95 = ssub.s32 %s8, 1
      // Predicated region
      $region13: #{tpu_custom_call.1} parent=11 // pred_check
        %p96 = pneg %p55
      $region14: #{tpu_custom_call.1} parent=11 // pred_check_branch
        %98 = sbr.rel (%p96) target = $region16
      $region15: #{tpu_custom_call.1} parent=11 // pred_region
        _
      $region16: #{tpu_custom_call.1} parent=11 // pred_fallthru
        _
    $region12: #{tpu_custom_call.1} parent=5 // pred_fallthru
      _
    %p99 = scmp.lt.s32.totalorder %s8, 2
    // Predicated region
    $region17: #{tpu_custom_call.1} parent=5 // pred_check
      %p100 = pneg %p99
    $region18: #{tpu_custom_call.1} parent=5 // pred_check_branch
      %102 = sbr.rel (%p100) target = $region20
    $region19: #{tpu_custom_call.1} parent=5 // pred_region
      // Predicated region
      $region21: #{tpu_custom_call.1} parent=19 // pred_check
        %p103 = pneg %p28
      $region22: #{tpu_custom_call.1} parent=19 // pred_check_branch
        %105 = sbr.rel (%p103) target = $region24
      $region23: #{tpu_custom_call.1} parent=19 // pred_region
        %s106 = smul.u32 32, %s8
        %p107 = scmp.lt.s32.totalorder %s106, 63
        %s108 = scalar_select %p107, %s106, 63
        %s109 = smul.addr %s108, 8
        %s110 = scalar_lea.vmem %s0, %s109
        %s111 = smul.u32 32, %s8
      $region24: #{tpu_custom_call.1} parent=19 // pred_fallthru
        _
    $region20: #{tpu_custom_call.1} parent=5 // pred_fallthru
      _
    %p112 = scmp.le.s32.totalorder 1, %s8
    %p113 = scmp.lt.s32.totalorder %s8, 3
    %p114 = pnand %p112, %p113
    %p115 = pneg %p114
    // Predicated region
    $region25: #{tpu_custom_call.1} parent=5 // pred_check
      _
    $region26: #{tpu_custom_call.1} parent=5 // pred_check_branch
      %117 = sbr.rel (%p114) target = $region28
    $region27: #{tpu_custom_call.1} parent=5 // pred_region
      %s118 = ssub.s32 %s8, 1
      %s119 = smul.u32 32, %s13
      %p120 = scmp.lt.s32.totalorder %s119, 63
      %s121 = scalar_select %p120, %s119, 63
      %s122 = smul.addr %s121, 8
      %s123 = scalar_lea.vmem %s0, %s122
      %p124 = pneg %p34
      %p125 = pneg %p31
      %p126 = pneg %p55
      %p127 = pneg %p52
      %p128 = pneg %p81
      %p129 = pneg %p78
      %s130 = smul.u32 32, %s13
      %p131 = scmp.lt.s32.totalorder %s130, 63
      %s132 = scalar_select %p131, %s130, 63
      %s133 = smul.addr %s132, 8
      %s134 = scalar_lea.vmem %s2, %s133
      %s135 = smul.u32 32, %s13
      %p136 = scmp.lt.s32.totalorder %s135, 63
      %s137 = scalar_select %p136, %s135, 63
      %s138 = smul.addr %s137, 8
      %s139 = scalar_lea.vmem %s0, %s138
      %s140 = smul.u32 32, %s13
      %s141 = smul.u32 32, %s13
      %p142 = scmp.lt.s32.totalorder %s141, 63
      %s143 = scalar_select %p142, %s141, 63
      %s144 = smul.addr %s143, 8
      %s145 = scalar_lea.vmem %s2, %s144
      %s146 = smul.u32 32, %s13
      %v148 = vld [vmem:[%s139] sm:$0xff]
      %v149 = vld [vmem:[%s139 + $0x8] sm:$0xff]
      %v150 = vld [vmem:[%s139 + $0x10] sm:$0xff]
      %v151 = vld [vmem:[%s139 + $0x18] sm:$0xff]
      %v152 = vld [vmem:[%s139 + $0x20] sm:$0xff]
      %v153 = vld [vmem:[%s139 + $0x28] sm:$0xff]
      %v154 = vld [vmem:[%s139 + $0x30] sm:$0xff]
      %v155 = vld [vmem:[%s139 + $0x38] sm:$0xff]
      %v156 = vld [vmem:[%s139 + $0x40] sm:$0xff]
      %v157 = vld [vmem:[%s139 + $0x48] sm:$0xff]
      %v158 = vld [vmem:[%s139 + $0x50] sm:$0xff]
      %v159 = vld [vmem:[%s139 + $0x58] sm:$0xff]
      %v160 = vld [vmem:[%s139 + $0x60] sm:$0xff]
      %v161 = vld [vmem:[%s139 + $0x68] sm:$0xff]
      %v162 = vld [vmem:[%s139 + $0x70] sm:$0xff]
      %v163 = vld [vmem:[%s139 + $0x78] sm:$0xff]
      %v164 = vld [vmem:[%s139 + $0x80] sm:$0xff]
      %v165 = vld [vmem:[%s139 + $0x88] sm:$0xff]
      %v166 = vld [vmem:[%s139 + $0x90] sm:$0xff]
      %v167 = vld [vmem:[%s139 + $0x98] sm:$0xff]
      %v168 = vld [vmem:[%s139 + $0xa0] sm:$0xff]
      %v169 = vld [vmem:[%s139 + $0xa8] sm:$0xff]
      %v170 = vld [vmem:[%s139 + $0xb0] sm:$0xff]
      %v171 = vld [vmem:[%s139 + $0xb8] sm:$0xff]
      %v172 = vld [vmem:[%s139 + $0xc0] sm:$0xff]
      %v173 = vld [vmem:[%s139 + $0xc8] sm:$0xff]
      %v174 = vld [vmem:[%s139 + $0xd0] sm:$0xff]
      %v175 = vld [vmem:[%s139 + $0xd8] sm:$0xff]
      %v176 = vld [vmem:[%s139 + $0xe0] sm:$0xff]
      %v177 = vld [vmem:[%s139 + $0xe8] sm:$0xff]
      %v178 = vld [vmem:[%s139 + $0xf0] sm:$0xff]
      %v179 = vld [vmem:[%s139 + $0xf8] sm:$0xff]
      %v180 = vpack.c.bf16 %v149, %v148
      %v181 = vpack.c.bf16 %v151, %v150
      %v182 = vpack.c.bf16 %v153, %v152
      %v183 = vpack.c.bf16 %v155, %v154
      %v184 = vpack.c.bf16 %v157, %v156
      %v185 = vpack.c.bf16 %v159, %v158
      %v186 = vpack.c.bf16 %v161, %v160
      %v187 = vpack.c.bf16 %v163, %v162
      %v188 = vpack.c.bf16 %v165, %v164
      %v189 = vpack.c.bf16 %v167, %v166
      %v190 = vpack.c.bf16 %v169, %v168
      %v191 = vpack.c.bf16 %v171, %v170
      %v192 = vpack.c.bf16 %v173, %v172
      %v193 = vpack.c.bf16 %v175, %v174
      %v194 = vpack.c.bf16 %v177, %v176
      %v195 = vpack.c.bf16 %v179, %v178
      %v196 = vld [vmem:[%s1] sm:$0xf]
      %v197 = vld [vmem:[%s1 + $0x4] sm:$0xf]
      %v200 = vunpack.c.l.b16 %v196
      %v201 = vunpack.c.l.b16 %v197
      %v202 = vpack.c.b16 %v201, %v200
      %vm204 = vcmask 130048
      %v206 = vsel %vm204, %v180, 0
      %v209 = vsel %vm204, %v181, 0
      %v212 = vsel %vm204, %v182, 0
      %v215 = vsel %vm204, %v183, 0
      %v218 = vsel %vm204, %v184, 0
      %v221 = vsel %vm204, %v185, 0
      %v224 = vsel %vm204, %v186, 0
      %v227 = vsel %vm204, %v187, 0
      %v230 = vsel %vm204, %v188, 0
      %v233 = vsel %vm204, %v189, 0
      %v236 = vsel %vm204, %v190, 0
      %v239 = vsel %vm204, %v191, 0
      %v242 = vsel %vm204, %v192, 0
      %v245 = vsel %vm204, %v193, 0
      %v248 = vsel %vm204, %v194, 0
      %v251 = vsel %vm204, %v195, 0
      %253 = vmatprep.subr.bf16.mxu0 0
      %254 = vmatpush1.bf16.msra.mxu0 0
      %255 = vmatprep.subr.bf16.mxu0 0
      %256 = vmatpush1.bf16.msra.mxu0 0
      %257 = vmatprep.subr.bf16.mxu0 0
      %258 = vmatpush1.bf16.msra.mxu0 0
      %259 = vmatprep.subr.bf16.mxu0 0
      %260 = vmatpush1.bf16.msra.mxu0 0
      %261 = vmatprep.subr.bf16.mxu0 0
      %262 = vmatpush1.bf16.msra.mxu0 0
      %263 = vmatprep.subr.bf16.mxu0 0
      %264 = vmatpush1.bf16.msra.mxu0 0
      %265 = vmatprep.subr.bf16.mxu0 0
      %266 = vmatpush1.bf16.msra.mxu0 0
      %267 = vmatprep.subr.bf16.mxu0 0
      %268 = vmatpush1.bf16.msra.mxu0 %v202
      %269 = vmatprep.subr.bf16.mxu0 0
      %270 = vmatpush2.bf16.msra.mxu0 0
      %271 = vmatprep.subr.bf16.mxu0 0
      %272 = vmatpush2.bf16.msra.mxu0 0
      %273 = vmatprep.subr.bf16.mxu0 0
      %274 = vmatpush2.bf16.msra.mxu0 0
      %275 = vmatprep.subr.bf16.mxu0 0
      %276 = vmatpush2.bf16.msra.mxu0 0
      %277 = vmatprep.subr.bf16.mxu0 0
      %278 = vmatpush2.bf16.msra.mxu0 0
      %279 = vmatprep.subr.bf16.mxu0 0
      %280 = vmatpush2.bf16.msra.mxu0 0
      %281 = vmatprep.subr.bf16.mxu0 0
      %282 = vmatpush2.bf16.msra.mxu0 0
      %283 = vmatprep.subr.bf16.mxu0 0
      %284 = vmatpush2.bf16.msra.mxu0 0
      %285 = vmatprep.mubr.bf16.mxu0 0
      %286 = vmatmul.mubr.bf16.gmra.mxu0 %v206
      %v287 = vpop.f32.mrf.mxu0
      %v288 = vadd.f32 0.0, %v287
      %v289 = vpop.f32.mrf.mxu0
      %v290 = vpop.f32.mrf.mxu0
      %v291 = vadd.f32 0.0, %v290
      %v292 = vpop.f32.mrf.mxu0
      %293 = vmatprep.mubr.bf16.mxu0 0
      %294 = vmatmul.mubr.bf16.gmra.mxu0 %v209
      %v295 = vpop.f32.mrf.mxu0
      %v296 = vadd.f32 0.0, %v295
      %v297 = vpop.f32.mrf.mxu0
      %v298 = vpop.f32.mrf.mxu0
      %v299 = vadd.f32 0.0, %v298
      %v300 = vpop.f32.mrf.mxu0
      %301 = vmatprep.mubr.bf16.mxu0 0
      %302 = vmatmul.mubr.bf16.gmra.mxu0 %v212
      %v303 = vpop.f32.mrf.mxu0
      %v304 = vadd.f32 0.0, %v303
      %v305 = vpop.f32.mrf.mxu0
      %v306 = vpop.f32.mrf.mxu0
      %v307 = vadd.f32 0.0, %v306
      %v308 = vpop.f32.mrf.mxu0
      %309 = vmatprep.mubr.bf16.mxu0 0
      %310 = vmatmul.mubr.bf16.gmra.mxu0 %v215
      %v311 = vpop.f32.mrf.mxu0
      %v312 = vadd.f32 0.0, %v311
      %v313 = vpop.f32.mrf.mxu0
      %v314 = vpop.f32.mrf.mxu0
      %v315 = vadd.f32 0.0, %v314
      %v316 = vpop.f32.mrf.mxu0
      %317 = vmatprep.mubr.bf16.mxu0 0
      %318 = vmatmul.mubr.bf16.gmra.mxu0 %v218
      %v319 = vpop.f32.mrf.mxu0
      %v320 = vadd.f32 0.0, %v319
      %v321 = vpop.f32.mrf.mxu0
      %v322 = vpop.f32.mrf.mxu0
      %v323 = vadd.f32 0.0, %v322
      %v324 = vpop.f32.mrf.mxu0
      %325 = vmatprep.mubr.bf16.mxu0 0
      %326 = vmatmul.mubr.bf16.gmra.mxu0 %v221
      %v327 = vpop.f32.mrf.mxu0
      %v328 = vadd.f32 0.0, %v327
      %v329 = vpop.f32.mrf.mxu0
      %v330 = vpop.f32.mrf.mxu0
      %v331 = vadd.f32 0.0, %v330
      %v332 = vpop.f32.mrf.mxu0
      %333 = vmatprep.mubr.bf16.mxu0 0
      %334 = vmatmul.mubr.bf16.gmra.mxu0 %v224
      %v335 = vpop.f32.mrf.mxu0
      %v336 = vadd.f32 0.0, %v335
      %v337 = vpop.f32.mrf.mxu0
      %v338 = vpop.f32.mrf.mxu0
      %v339 = vadd.f32 0.0, %v338
      %v340 = vpop.f32.mrf.mxu0
      %341 = vmatprep.mubr.bf16.mxu0 0
      %342 = vmatmul.mubr.bf16.gmra.mxu0 %v227
      %v343 = vpop.f32.mrf.mxu0
      %v344 = vadd.f32 0.0, %v343
      %v345 = vpop.f32.mrf.mxu0
      %v346 = vpop.f32.mrf.mxu0
      %v347 = vadd.f32 0.0, %v346
      %v348 = vpop.f32.mrf.mxu0
      %349 = vmatprep.mubr.bf16.mxu0 0
      %350 = vmatmul.mubr.bf16.gmra.mxu0 %v230
      %v351 = vpop.f32.mrf.mxu0
      %v352 = vadd.f32 0.0, %v351
      %v353 = vpop.f32.mrf.mxu0
      %v354 = vpop.f32.mrf.mxu0
      %v355 = vadd.f32 0.0, %v354
      %v356 = vpop.f32.mrf.mxu0
      %357 = vmatprep.mubr.bf16.mxu0 0
      %358 = vmatmul.mubr.bf16.gmra.mxu0 %v233
      %v359 = vpop.f32.mrf.mxu0
      %v360 = vadd.f32 0.0, %v359
      %v361 = vpop.f32.mrf.mxu0
      %v362 = vpop.f32.mrf.mxu0
      %v363 = vadd.f32 0.0, %v362
      %v364 = vpop.f32.mrf.mxu0
      %365 = vmatprep.mubr.bf16.mxu0 0
      %366 = vmatmul.mubr.bf16.gmra.mxu0 %v236
      %v367 = vpop.f32.mrf.mxu0
      %v368 = vadd.f32 0.0, %v367
      %v369 = vpop.f32.mrf.mxu0
      %v370 = vpop.f32.mrf.mxu0
      %v371 = vadd.f32 0.0, %v370
      %v372 = vpop.f32.mrf.mxu0
      %373 = vmatprep.mubr.bf16.mxu0 0
      %374 = vmatmul.mubr.bf16.gmra.mxu0 %v239
      %v375 = vpop.f32.mrf.mxu0
      %v376 = vadd.f32 0.0, %v375
      %v377 = vpop.f32.mrf.mxu0
      %v378 = vpop.f32.mrf.mxu0
      %v379 = vadd.f32 0.0, %v378
      %v380 = vpop.f32.mrf.mxu0
      %381 = vmatprep.mubr.bf16.mxu0 0
      %382 = vmatmul.mubr.bf16.gmra.mxu0 %v242
      %v383 = vpop.f32.mrf.mxu0
      %v384 = vadd.f32 0.0, %v383
      %v385 = vpop.f32.mrf.mxu0
      %v386 = vpop.f32.mrf.mxu0
      %v387 = vadd.f32 0.0, %v386
      %v388 = vpop.f32.mrf.mxu0
      %389 = vmatprep.mubr.bf16.mxu0 0
      %390 = vmatmul.mubr.bf16.gmra.mxu0 %v245
      %v391 = vpop.f32.mrf.mxu0
      %v392 = vadd.f32 0.0, %v391
      %v393 = vpop.f32.mrf.mxu0
      %v394 = vpop.f32.mrf.mxu0
      %v395 = vadd.f32 0.0, %v394
      %v396 = vpop.f32.mrf.mxu0
      %397 = vmatprep.mubr.bf16.mxu0 0
      %398 = vmatmul.mubr.bf16.gmra.mxu0 %v248
      %v399 = vpop.f32.mrf.mxu0
      %v400 = vadd.f32 0.0, %v399
      %v401 = vpop.f32.mrf.mxu0
      %v402 = vpop.f32.mrf.mxu0
      %v403 = vadd.f32 0.0, %v402
      %v404 = vpop.f32.mrf.mxu0
      %405 = vmatprep.mubr.bf16.mxu0 0
      %406 = vmatmul.mubr.bf16.gmra.mxu0 %v251
      %v407 = vpop.f32.mrf.mxu0
      %v408 = vadd.f32 0.0, %v407
      %v409 = vpop.f32.mrf.mxu0
      %v410 = vpop.f32.mrf.mxu0
      %v411 = vadd.f32 0.0, %v410
      %v412 = vpop.f32.mrf.mxu0
      %413 = vdwg.mxu0
      %vm414 = vcmp.gt.f32.partialorder %v288, 0.0
      %vm415 = vcmp.gt.f32.partialorder %v291, 0.0
      %vm416 = vcmp.gt.f32.partialorder %v296, 0.0
      %vm417 = vcmp.gt.f32.partialorder %v299, 0.0
      %vm418 = vcmp.gt.f32.partialorder %v304, 0.0
      %vm419 = vcmp.gt.f32.partialorder %v307, 0.0
      %vm420 = vcmp.gt.f32.partialorder %v312, 0.0
      %vm421 = vcmp.gt.f32.partialorder %v315, 0.0
      %vm422 = vcmp.gt.f32.partialorder %v320, 0.0
      %vm423 = vcmp.gt.f32.partialorder %v323, 0.0
      %vm424 = vcmp.gt.f32.partialorder %v328, 0.0
      %vm425 = vcmp.gt.f32.partialorder %v331, 0.0
      %vm426 = vcmp.gt.f32.partialorder %v336, 0.0
      %vm427 = vcmp.gt.f32.partialorder %v339, 0.0
      %vm428 = vcmp.gt.f32.partialorder %v344, 0.0
      %vm429 = vcmp.gt.f32.partialorder %v347, 0.0
      %vm430 = vcmp.gt.f32.partialorder %v352, 0.0
      %vm431 = vcmp.gt.f32.partialorder %v355, 0.0
      %vm432 = vcmp.gt.f32.partialorder %v360, 0.0
      %vm433 = vcmp.gt.f32.partialorder %v363, 0.0
      %vm434 = vcmp.gt.f32.partialorder %v368, 0.0
      %vm435 = vcmp.gt.f32.partialorder %v371, 0.0
      %vm436 = vcmp.gt.f32.partialorder %v376, 0.0
      %vm437 = vcmp.gt.f32.partialorder %v379, 0.0
      %vm438 = vcmp.gt.f32.partialorder %v384, 0.0
      %vm439 = vcmp.gt.f32.partialorder %v387, 0.0
      %vm440 = vcmp.gt.f32.partialorder %v392, 0.0
      %vm441 = vcmp.gt.f32.partialorder %v395, 0.0
      %vm442 = vcmp.gt.f32.partialorder %v400, 0.0
      %vm443 = vcmp.gt.f32.partialorder %v403, 0.0
      %vm444 = vcmp.gt.f32.partialorder %v408, 0.0
      %vm445 = vcmp.gt.f32.partialorder %v411, 0.0
      %v446 = vmul.f32 %v288, 0.2
      %v447 = vmul.f32 %v291, 0.2
      %v448 = vmul.f32 %v296, 0.2
      %v449 = vmul.f32 %v299, 0.2
      %v450 = vmul.f32 %v304, 0.2
      %v451 = vmul.f32 %v307, 0.2
      %v452 = vmul.f32 %v312, 0.2
      %v453 = vmul.f32 %v315, 0.2
      %v454 = vmul.f32 %v320, 0.2
      %v455 = vmul.f32 %v323, 0.2
      %v456 = vmul.f32 %v328, 0.2
      %v457 = vmul.f32 %v331, 0.2
      %v458 = vmul.f32 %v336, 0.2
      %v459 = vmul.f32 %v339, 0.2
      %v460 = vmul.f32 %v344, 0.2
      %v461 = vmul.f32 %v347, 0.2
      %v462 = vmul.f32 %v352, 0.2
      %v463 = vmul.f32 %v355, 0.2
      %v464 = vmul.f32 %v360, 0.2
      %v465 = vmul.f32 %v363, 0.2
      %v466 = vmul.f32 %v368, 0.2
      %v467 = vmul.f32 %v371, 0.2
      %v468 = vmul.f32 %v376, 0.2
      %v469 = vmul.f32 %v379, 0.2
      %v470 = vmul.f32 %v384, 0.2
      %v471 = vmul.f32 %v387, 0.2
      %v472 = vmul.f32 %v392, 0.2
      %v473 = vmul.f32 %v395, 0.2
      %v474 = vmul.f32 %v400, 0.2
      %v475 = vmul.f32 %v403, 0.2
      %v476 = vmul.f32 %v408, 0.2
      %v477 = vmul.f32 %v411, 0.2
      %v478 = vsel %vm414, %v288, %v446
      %v479 = vsel %vm415, %v291, %v447
      %v480 = vsel %vm416, %v296, %v448
      %v481 = vsel %vm417, %v299, %v449
      %v482 = vsel %vm418, %v304, %v450
      %v483 = vsel %vm419, %v307, %v451
      %v484 = vsel %vm420, %v312, %v452
      %v485 = vsel %vm421, %v315, %v453
      %v486 = vsel %vm422, %v320, %v454
      %v487 = vsel %vm423, %v323, %v455
      %v488 = vsel %vm424, %v328, %v456
      %v489 = vsel %vm425, %v331, %v457
      %v490 = vsel %vm426, %v336, %v458
      %v491 = vsel %vm427, %v339, %v459
      %v492 = vsel %vm428, %v344, %v460
      %v493 = vsel %vm429, %v347, %v461
      %v494 = vsel %vm430, %v352, %v462
      %v495 = vsel %vm431, %v355, %v463
      %v496 = vsel %vm432, %v360, %v464
      %v497 = vsel %vm433, %v363, %v465
      %v498 = vsel %vm434, %v368, %v466
      %v499 = vsel %vm435, %v371, %v467
      %v500 = vsel %vm436, %v376, %v468
      %v501 = vsel %vm437, %v379, %v469
      %v502 = vsel %vm438, %v384, %v470
      %v503 = vsel %vm439, %v387, %v471
      %v504 = vsel %vm440, %v392, %v472
      %v505 = vsel %vm441, %v395, %v473
      %v506 = vsel %vm442, %v400, %v474
      %v507 = vsel %vm443, %v403, %v475
      %v508 = vsel %vm444, %v408, %v476
      %v509 = vsel %vm445, %v411, %v477
      %vm510 = vcmask 523264
      %511 = vst.msk [vmem:[%s145] sm:$0xff] %vm510, %v478
      %512 = vst.msk [vmem:[%s145 + $0x8] sm:$0xff] %vm510, %v479
      %513 = vst.msk [vmem:[%s145 + $0x10] sm:$0xff] %vm510, %v480
      %514 = vst.msk [vmem:[%s145 + $0x18] sm:$0xff] %vm510, %v481
      %515 = vst.msk [vmem:[%s145 + $0x20] sm:$0xff] %vm510, %v482
      %516 = vst.msk [vmem:[%s145 + $0x28] sm:$0xff] %vm510, %v483
      %517 = vst.msk [vmem:[%s145 + $0x30] sm:$0xff] %vm510, %v484
      %518 = vst.msk [vmem:[%s145 + $0x38] sm:$0xff] %vm510, %v485
      %519 = vst.msk [vmem:[%s145 + $0x40] sm:$0xff] %vm510, %v486
      %520 = vst.msk [vmem:[%s145 + $0x48] sm:$0xff] %vm510, %v487
      %521 = vst.msk [vmem:[%s145 + $0x50] sm:$0xff] %vm510, %v488
      %522 = vst.msk [vmem:[%s145 + $0x58] sm:$0xff] %vm510, %v489
      %523 = vst.msk [vmem:[%s145 + $0x60] sm:$0xff] %vm510, %v490
      %524 = vst.msk [vmem:[%s145 + $0x68] sm:$0xff] %vm510, %v491
      %525 = vst.msk [vmem:[%s145 + $0x70] sm:$0xff] %vm510, %v492
      %526 = vst.msk [vmem:[%s145 + $0x78] sm:$0xff] %vm510, %v493
      %527 = vst.msk [vmem:[%s145 + $0x80] sm:$0xff] %vm510, %v494
      %528 = vst.msk [vmem:[%s145 + $0x88] sm:$0xff] %vm510, %v495
      %529 = vst.msk [vmem:[%s145 + $0x90] sm:$0xff] %vm510, %v496
      %530 = vst.msk [vmem:[%s145 + $0x98] sm:$0xff] %vm510, %v497
      %531 = vst.msk [vmem:[%s145 + $0xa0] sm:$0xff] %vm510, %v498
      %532 = vst.msk [vmem:[%s145 + $0xa8] sm:$0xff] %vm510, %v499
      %533 = vst.msk [vmem:[%s145 + $0xb0] sm:$0xff] %vm510, %v500
      %534 = vst.msk [vmem:[%s145 + $0xb8] sm:$0xff] %vm510, %v501
      %535 = vst.msk [vmem:[%s145 + $0xc0] sm:$0xff] %vm510, %v502
      %536 = vst.msk [vmem:[%s145 + $0xc8] sm:$0xff] %vm510, %v503
      %537 = vst.msk [vmem:[%s145 + $0xd0] sm:$0xff] %vm510, %v504
      %538 = vst.msk [vmem:[%s145 + $0xd8] sm:$0xff] %vm510, %v505
      %539 = vst.msk [vmem:[%s145 + $0xe0] sm:$0xff] %vm510, %v506
      %540 = vst.msk [vmem:[%s145 + $0xe8] sm:$0xff] %vm510, %v507
      %541 = vst.msk [vmem:[%s145 + $0xf0] sm:$0xff] %vm510, %v508
      %542 = vst.msk [vmem:[%s145 + $0xf8] sm:$0xff] %vm510, %v509
      %s543 = smul.u32 32, %s13
      %p544 = scmp.lt.s32.totalorder %s543, 63
      %s545 = scalar_select %p544, %s543, 63
      %s546 = smul.addr %s545, 8
      %s547 = scalar_lea.vmem %s2, %s546
      // Predicated region
      $region29: #{tpu_custom_call.1} parent=27 // pred_check
        %p548 = pneg %p78
      $region30: #{tpu_custom_call.1} parent=27 // pred_check_branch
        %550 = sbr.rel (%p548) target = $region32
      $region31: #{tpu_custom_call.1} parent=27 // pred_region
        %s551 = smul.u32 32, %s13
      $region32: #{tpu_custom_call.1} parent=27 // pred_fallthru
        _
    $region28: #{tpu_custom_call.1} parent=5 // pred_fallthru
      _
    %p552 = scmp.le.s32.totalorder 2, %s8
    // Predicated region
    $region33: #{tpu_custom_call.1} parent=5 // pred_check
      %p553 = pneg %p552
    $region34: #{tpu_custom_call.1} parent=5 // pred_check_branch
      %555 = sbr.rel (%p553) target = $region36
    $region35: #{tpu_custom_call.1} parent=5 // pred_region
      %s556 = ssub.s32 %s8, 2
      // Predicated region
      $region37: #{tpu_custom_call.1} parent=35 // pred_check
        %p557 = pneg %p84
      $region38: #{tpu_custom_call.1} parent=35 // pred_check_branch
        %559 = sbr.rel (%p557) target = $region40
      $region39: #{tpu_custom_call.1} parent=35 // pred_region
        %s560 = smul.u32 32, %s14
        %p561 = scmp.lt.s32.totalorder %s560, 63
        %s562 = scalar_select %p561, %s560, 63
        %s563 = smul.addr %s562, 8
        %s564 = scalar_lea.vmem %s2, %s563
      $region40: #{tpu_custom_call.1} parent=35 // pred_fallthru
        _
    $region36: #{tpu_custom_call.1} parent=5 // pred_fallthru
      _
  $region6: #{tpu_custom_call.1} parent=0 // loop_footer
    %s12 = sadd.s32 1, %s8
  $region7: #{tpu_custom_call.1} parent=0 // loop_footer_branch
    %7 = sbr.rel target = $region3
  $region8: #{tpu_custom_call.1} parent=0 // loop_exit
    _

</llo_original>
